<compile_context>
chip_gen: v5e
topology: v5e:2x2
jax: 0.10.0
libtpu: 0.0.40
codegen_flags: <defaults>
</compile_context>

<pallas_src>
import math

import jax
import jax.numpy as jnp
from jax import lax
from jax.experimental import pallas as pl
from jax.experimental.pallas import tpu as pltpu

# ---------------- config (small, consistent with the module) ----------------
B, T = 2, 8                 # batch, sequence length
INPUT_DIM = 8               # input_dim
EMB_DIM = 32                # emb_dim
NUM_CHANNELS = (16, 32)     # num_channels for the TCN (2 temporal blocks)
KERNEL_SZ = 3               # kernel_sz (must be odd)
DROPOUT = 0.1               # inference mode -> identity
SCALE = math.sqrt(0.5)      # torch.sqrt(FloatTensor([0.5]))

assert KERNEL_SZ % 2 == 1, "Kernel size must be odd!"
assert max(NUM_CHANNELS) <= EMB_DIM

C = EMB_DIM                 # uniform (zero-padded) channel width inside the kernel
C2 = 2 * C                  # fused [conv1 | residual] width / slab lane width
K = KERNEL_SZ
IN_PAD = 16                 # input features zero-padded to a bf16 sublane tile

# ------- packed weight slab layout (row offsets; all multiples of 16) --------
OFF_WE = 0                          # embed:            (IN_PAD, C)
OFF_F1A = OFF_WE + IN_PAD           # blockA cv1+dwn:   (K*C, 2C)
OFF_W2A = OFF_F1A + K * C           # blockA cv2:       (K*C, C)
OFF_F1B = OFF_W2A + K * C           # blockB cv1+dwn:   (K*C, 2C)
OFF_W2B = OFF_F1B + K * C           # blockB cv2:       (K*C, C)
OFF_WC = OFF_W2B + K * C            # conv2emb:         (C, C)
W_ROWS = OFF_WC + C                 # 432

# bias slab (8, 2C): one row per layer; fused rows hold [conv1 bias | downsample bias]
B_BE, B_F1A, B_2A, B_F1B, B_2B, B_BC = range(6)
B_ROWS = 8


# ------------------------------- Pallas kernel -------------------------------
def encoder_kernel(x_ref, w_ref, b_ref, out_ref):
    x = x_ref[...]                                  # (B*T, IN_PAD) f32
    BT = x.shape[0]
    bvals = b_ref[...]                              # (B_ROWS, 2C) f32, loaded once

    # Hoisted once: position of each row inside its sequence on the collapsed B*T axis,
    # plus the only three shift masks actually needed (dilations 1 & 2, kernel 3).
    t_idx = lax.broadcasted_iota(jnp.int32, (BT, 1), 0) % T
    masks = {s: t_idx >= s for s in (1, 2, 4)}

    def bias(i, cols=C):
        return bvals[i:i + 1, :cols]                # slice of the in-register slab

    def mm(a, off, rows, cols=C):
        # bf16 operands (single-pass MXU), f32 accumulation.
        w = w_ref[off:off + rows, :cols]
        return jnp.dot(a.astype(jnp.bfloat16), w, preferred_element_type=jnp.float32)

    def shifted(h, s):
        # shifted[j] = h[j - s], zeroed where the shift crosses a sequence boundary
        # (implements Conv1d left zero-padding + Chomp1d, per-batch on the collapsed axis).
        if s == 0:
            return h
        return jnp.where(masks[s], pltpu.roll(h, shift=s, axis=0), 0.0)

    def taps_of(h, dilation):
        # K causally-shifted copies concatenated along channels; last tap is h itself.
        return jnp.concatenate(
            [shifted(h, (K - 1 - k) * dilation) for k in range(K)], axis=1)

    def temporal_block(h, f1_off, bf1, w2_off, b2, dilation):
        taps = taps_of(h, dilation)
        # Fused matmul: [conv1 out | downsample residual] in one (BT,K*C)@(K*C,2C) dot
        # (downsample weight lives in the shift-0 tap rows of cols C:2C).
        fused = mm(taps, f1_off, K * C, C2) + bias(bf1, C2)
        o = jnp.maximum(fused[:, :C], 0.0)
        res = fused[:, C:]
        # TODO(synk): nn.Dropout is identity here (inference mode).
        o = jnp.maximum(mm(taps_of(o, dilation), w2_off, K * C) + bias(b2), 0.0)
        return jnp.maximum(o + res, 0.0)

    # embed = nn.Linear(input_dim, emb_dim)  (input zero-padded to IN_PAD features)
    embed = mm(x, OFF_WE, IN_PAD) + bias(B_BE)

    # TemporalConvNet: two blocks, dilations 1 and 2
    h = temporal_block(embed, OFF_F1A, B_F1A, OFF_W2A, B_2A, dilation=1)
    h = temporal_block(h, OFF_F1B, B_F1B, OFF_W2B, B_2B, dilation=2)

    # conv2emb = nn.Linear(num_channels[-1], emb_dim)
    conved = mm(h, OFF_WC, C) + bias(B_BC)
    combined = (conved + embed) * jnp.float32(SCALE)

    # single lane-dense store: [conved | combined]
    out_ref[...] = jnp.concatenate([conved, combined], axis=1)


# --------------------------------- wrapper -----------------------------------
def pack_params(params):
    """Pack the 16 per-layer parameters into one bf16 weight slab and one f32 bias slab.

    Channel dims are zero-padded to C (= emb_dim); each block's downsample weight is fused
    into cols [C:2C] of the conv1 weight rows corresponding to the shift-0 (last) tap.
    """
    (we, be, w1a, b1a, w2a, b2a, wda, bda,
     w1b, b1b, w2b, b2b, wdb, bdb, wc, bc) = params

    def pad2(w, rows, cols):
        return jnp.pad(w, ((0, rows - w.shape[0]), (0, cols - w.shape[1])))

    def conv_rows(w):                        # (K, cin, cout) -> (K*C, C)
        k, cin, cout = w.shape
        w = jnp.pad(w, ((0, 0), (0, C - cin), (0, C - cout)))
        return w.reshape(k * C, C)

    def fused_conv1(w1, wd):                 # -> (K*C, 2C): [conv1 | downsample@shift-0 rows]
        left = conv_rows(w1)
        right = jnp.zeros((K * C, C), jnp.float32)
        right = right.at[(K - 1) * C:(K - 1) * C + wd.shape[0], :wd.shape[1]].set(wd)
        return jnp.concatenate([left, right], axis=1)

    w_slab = jnp.concatenate([
        pad2(we, IN_PAD, C2),
        fused_conv1(w1a, wda),
        pad2(conv_rows(w2a), K * C, C2),
        fused_conv1(w1b, wdb),
        pad2(conv_rows(w2b), K * C, C2),
        pad2(wc, C, C2),
    ], axis=0).astype(jnp.bfloat16)
    assert w_slab.shape == (W_ROWS, C2)

    def brow(*bs):
        row = jnp.zeros((1, C2), jnp.float32)
        col = 0
        for bvec in bs:
            row = row.at[:, col:col + bvec.shape[1]].set(bvec)
            col += C
        return row

    b_slab = jnp.concatenate([
        brow(be), brow(b1a, bda), brow(b2a),
        brow(b1b, bdb), brow(b2b), brow(bc),
        jnp.zeros((2, C2), jnp.float32),
    ], axis=0)
    assert b_slab.shape == (B_ROWS, C2)

    return w_slab, b_slab


@jax.jit
def encoder_forward(x, w_slab, b_slab):
    b, t, d = x.shape
    x2 = x.reshape(b * t, d)
    x2 = jnp.pad(x2, ((0, 0), (0, IN_PAD - d))).astype(jnp.float32)
    # TODO(synk): for large B*T, grid over row blocks (multiples of T, >=256 rows) with
    # constant index_maps keeping w/b VMEM-resident and dimension_semantics=("parallel",)
    # so v7x can shard blocks across its 2 TensorCores.
    out = pl.pallas_call(
        encoder_kernel,
        out_shape=jax.ShapeDtypeStruct((b * t, C2), jnp.float32),
        in_specs=[pl.BlockSpec(memory_space=pltpu.MemorySpace.VMEM)] * 3,
        out_specs=pl.BlockSpec(memory_space=pltpu.MemorySpace.VMEM),
    )(x2, w_slab, b_slab)
    conved = out[:, :EMB_DIM].reshape(b, t, EMB_DIM)
    combined = out[:, EMB_DIM:].reshape(b, t, EMB_DIM)
    return conved, combined


# ------------------------- pure-JAX reference (check) -------------------------
def ref_forward(x, params, mm_dtype=jnp.float32):
    (we, be,
     w1a, b1a, w2a, b2a, wda, bda,
     w1b, b1b, w2b, b2b, wdb, bdb,
     wc, bc) = params

    def mm(a, w):
        return jnp.einsum('btc,cd->btd', a.astype(mm_dtype), w.astype(mm_dtype),
                          preferred_element_type=jnp.float32)

    def causal_conv(h, w, b, dil):
        kk = w.shape[0]
        t = h.shape[1]
        out = jnp.zeros(h.shape[:2] + (w.shape[2],), jnp.float32)
        for k in range(kk):
            s = (kk - 1 - k) * dil
            z = mm(h, w[k])
            if s > 0:
                z = jnp.pad(z, ((0, 0), (s, 0), (0, 0)))[:, :t]
            out = out + z
        return out + b

    def block(h, w1, b1, w2, b2, wd, bd, dil):
        o = jax.nn.relu(causal_conv(h, w1, b1, dil))
        o = jax.nn.relu(causal_conv(o, w2, b2, dil))
        res = mm(h, wd) + bd
        return jax.nn.relu(o + res)

    embed = mm(x, we) + be
    h = block(embed, w1a, b1a, w2a, b2a, wda, bda, 1)
    h = block(h, w1b, b1b, w2b, b2b, wdb, bdb, 2)
    conved = mm(h, wc) + bc
    combined = (conved + embed) * jnp.float32(SCALE)
    return conved, combined


# ----------------------------------- main ------------------------------------
if __name__ == "__main__":
    key = jax.random.PRNGKey(0)
    keys = jax.random.split(key, 20)

    def nrm(k, shape):
        return jax.random.normal(k, shape, dtype=jnp.float32) * 0.1

    # nn.Linear(input_dim, emb_dim) stored transposed (in, out); bias as (1, out)
    we = nrm(keys[0], (INPUT_DIM, EMB_DIM))
    be = nrm(keys[1], (1, EMB_DIM))

    # TemporalConvNet params (weight_norm at init is a reparam; direct weights used)
    chans = [EMB_DIM] + list(NUM_CHANNELS)
    ki = 2
    layer_params = []
    for i in range(len(NUM_CHANNELS)):
        cin, cout = chans[i], chans[i + 1]
        w1 = nrm(keys[ki], (KERNEL_SZ, cin, cout)); b1 = nrm(keys[ki + 1], (1, cout))
        w2 = nrm(keys[ki + 2], (KERNEL_SZ, cout, cout)); b2 = nrm(keys[ki + 3], (1, cout))
        wd = nrm(keys[ki + 4], (cin, cout)); bd = nrm(keys[ki + 5], (1, cout))
        layer_params += [w1, b1, w2, b2, wd, bd]
        ki += 6

    # nn.Linear(num_channels[-1], emb_dim)
    wc = nrm(keys[ki], (NUM_CHANNELS[-1], EMB_DIM))
    bc = nrm(keys[ki + 1], (1, EMB_DIM))

    params = tuple([we, be] + layer_params + [wc, bc])

    x = jax.random.normal(keys[ki + 2], (B, T, INPUT_DIM), dtype=jnp.float32)

    w_slab, b_slab = pack_params(params)
    conved, combined = encoder_forward(x, w_slab, b_slab)
    jax.block_until_ready((conved, combined))

    assert conved.shape == (B, T, EMB_DIM) and combined.shape == (B, T, EMB_DIM)

    # Tight check vs. a reference using the same matmul precision (bf16 operands, f32 acc).
    rc_b, rcm_b = ref_forward(x, params, mm_dtype=jnp.bfloat16)
    assert jnp.allclose(conved, rc_b, atol=1e-3, rtol=1e-3)
    assert jnp.allclose(combined, rcm_b, atol=1e-3, rtol=1e-3)

    # Bound drift vs. the full-f32 module semantics (bf16 matmul inputs, f32 accumulation).
    rc, rcm = ref_forward(x, params, mm_dtype=jnp.float32)
    assert jnp.allclose(conved, rc, atol=2e-2, rtol=2e-2)
    assert jnp.allclose(combined, rcm, atol=2e-2, rtol=2e-2)

    print("KERNEL_OK")
</pallas_src>

<mosaic_0001>
module attributes {stable_mosaic.version = 11 : i64} {
  func.func @encoder_kernel(%arg0: memref<16x16xf32, #tpu.memory_space<vmem>>, %arg1: memref<432x64xbf16, #tpu.memory_space<vmem>>, %arg2: memref<8x64xf32, #tpu.memory_space<vmem>>, %arg3: memref<16x64xf32, #tpu.memory_space<vmem>>) attributes {dimension_semantics = [], scalar_prefetch = 0 : i64, scratch_operands = 0 : i64, tpu.core_type = #tpu.core_type<tc>} {
    %c0 = arith.constant 0 : index
    %c0_0 = arith.constant 0 : index
    %0 = vector.load %arg0[%c0, %c0_0] : memref<16x16xf32, #tpu.memory_space<vmem>>, vector<16x16xf32>
    %c0_1 = arith.constant 0 : index
    %c0_2 = arith.constant 0 : index
    %1 = vector.load %arg2[%c0_1, %c0_2] : memref<8x64xf32, #tpu.memory_space<vmem>>, vector<8x64xf32>
    %2 = tpu.iota {dimensions = array<i32: 0>} : vector<16x1xi32>
    %c8_i32 = arith.constant 8 : i32
    %c0_i32 = arith.constant 0 : i32
    %3 = arith.cmpi eq, %c8_i32, %c0_i32 : i32
    %c1_i32 = arith.constant 1 : i32
    %4 = arith.select %3, %c1_i32, %c8_i32 : i32
    %5 = vector.broadcast %4 : i32 to vector<16x1xi32>
    %6 = arith.remsi %2, %5 : vector<16x1xi32>
    %c0_i32_3 = arith.constant 0 : i32
    %7 = vector.broadcast %c0_i32_3 : i32 to vector<16x1xi32>
    %8 = arith.cmpi ne, %6, %7 : vector<16x1xi32>
    %c0_i32_4 = arith.constant 0 : i32
    %9 = vector.broadcast %c0_i32_4 : i32 to vector<16x1xi32>
    %10 = arith.cmpi slt, %6, %9 : vector<16x1xi32>
    %c0_i32_5 = arith.constant 0 : i32
    %11 = arith.cmpi slt, %4, %c0_i32_5 : i32
    %12 = vector.broadcast %11 : i1 to vector<16x1xi1>
    %13 = vector.broadcast %12 : vector<16x1xi1> to vector<16x1xi1>
    %14 = arith.xori %10, %13 : vector<16x1xi1>
    %15 = arith.andi %14, %8 : vector<16x1xi1>
    %16 = vector.broadcast %4 : i32 to vector<16x1xi32>
    %17 = arith.addi %6, %16 : vector<16x1xi32>
    %18 = arith.select %15, %17, %6 : vector<16x1xi1>, vector<16x1xi32>
    %c1_i32_6 = arith.constant 1 : i32
    %19 = vector.broadcast %c1_i32_6 : i32 to vector<16x1xi32>
    %20 = arith.cmpi sge, %18, %19 : vector<16x1xi32>
    %c2_i32 = arith.constant 2 : i32
    %21 = vector.broadcast %c2_i32 : i32 to vector<16x1xi32>
    %22 = arith.cmpi sge, %18, %21 : vector<16x1xi32>
    %c4_i32 = arith.constant 4 : i32
    %23 = vector.broadcast %c4_i32 : i32 to vector<16x1xi32>
    %24 = arith.cmpi sge, %18, %23 : vector<16x1xi32>
    %c0_7 = arith.constant 0 : index
    %c0_8 = arith.constant 0 : index
    %25 = vector.load %arg1[%c0_7, %c0_8] : memref<432x64xbf16, #tpu.memory_space<vmem>>, vector<16x32xbf16>
    %26 = arith.truncf %0 : vector<16x16xf32> to vector<16x16xbf16>
    %cst = arith.constant dense<0.000000e+00> : vector<16x32xf32>
    %27 = tpu.matmul %26, %25, %cst {dimension_numbers = #tpu.dot_dimension_numbers<[1], [0], [0], [1], [0, 0, 1, 1], [], []>} : vector<16x16xbf16>, vector<16x32xbf16>, vector<16x32xf32> -> vector<16x32xf32>
    %28 = vector.extract_strided_slice %1 {offsets = [0, 0], sizes = [1, 32], strides = [1, 1]} : vector<8x64xf32> to vector<1x32xf32>
    %29 = vector.broadcast %28 : vector<1x32xf32> to vector<16x32xf32>
    %30 = arith.addf %27, %29 : vector<16x32xf32>
    %c2_i32_9 = arith.constant 2 : i32
    %31 = tpu.dynamic_rotate %30 by %c2_i32_9 dim 0 : vector<16x32xf32>, i32 -> vector<16x32xf32>
    %cst_10 = arith.constant 0.000000e+00 : f32
    %32 = vector.shape_cast %22 : vector<16x1xi1> to vector<16x1xi1>
    %33 = vector.broadcast %32 : vector<16x1xi1> to vector<16x32xi1>
    %34 = vector.broadcast %cst_10 : f32 to vector<16x32xf32>
    %35 = arith.select %33, %31, %34 : vector<16x32xi1>, vector<16x32xf32>
    %c1_i32_11 = arith.constant 1 : i32
    %36 = tpu.dynamic_rotate %30 by %c1_i32_11 dim 0 : vector<16x32xf32>, i32 -> vector<16x32xf32>
    %cst_12 = arith.constant 0.000000e+00 : f32
    %37 = vector.shape_cast %20 : vector<16x1xi1> to vector<16x1xi1>
    %38 = vector.broadcast %37 : vector<16x1xi1> to vector<16x32xi1>
    %39 = vector.broadcast %cst_12 : f32 to vector<16x32xf32>
    %40 = arith.select %38, %36, %39 : vector<16x32xi1>, vector<16x32xf32>
    %41 = tpu.concatenate %35, %40, %30 in 1 : vector<16x32xf32>, vector<16x32xf32>, vector<16x32xf32> -> vector<16x96xf32>
    %c16 = arith.constant 16 : index
    %c0_13 = arith.constant 0 : index
    %42 = vector.load %arg1[%c16, %c0_13] : memref<432x64xbf16, #tpu.memory_space<vmem>>, vector<96x64xbf16>
    %43 = arith.truncf %41 : vector<16x96xf32> to vector<16x96xbf16>
    %cst_14 = arith.constant dense<0.000000e+00> : vector<16x64xf32>
    %44 = tpu.matmul %43, %42, %cst_14 {dimension_numbers = #tpu.dot_dimension_numbers<[1], [0], [0], [1], [0, 0, 1, 1], [], []>} : vector<16x96xbf16>, vector<96x64xbf16>, vector<16x64xf32> -> vector<16x64xf32>
    %45 = vector.extract_strided_slice %1 {offsets = [1, 0], sizes = [1, 64], strides = [1, 1]} : vector<8x64xf32> to vector<1x64xf32>
    %46 = vector.broadcast %45 : vector<1x64xf32> to vector<16x64xf32>
    %47 = arith.addf %44, %46 : vector<16x64xf32>
    %48 = vector.extract_strided_slice %47 {offsets = [0, 0], sizes = [16, 32], strides = [1, 1]} : vector<16x64xf32> to vector<16x32xf32>
    %cst_15 = arith.constant 0.000000e+00 : f32
    %49 = vector.broadcast %cst_15 : f32 to vector<16x32xf32>
    %50 = arith.maximumf %48, %49 : vector<16x32xf32>
    %51 = vector.extract_strided_slice %47 {offsets = [0, 32], sizes = [16, 32], strides = [1, 1]} : vector<16x64xf32> to vector<16x32xf32>
    %c2_i32_16 = arith.constant 2 : i32
    %52 = tpu.dynamic_rotate %50 by %c2_i32_16 dim 0 : vector<16x32xf32>, i32 -> vector<16x32xf32>
    %cst_17 = arith.constant 0.000000e+00 : f32
    %53 = vector.shape_cast %22 : vector<16x1xi1> to vector<16x1xi1>
    %54 = vector.broadcast %53 : vector<16x1xi1> to vector<16x32xi1>
    %55 = vector.broadcast %cst_17 : f32 to vector<16x32xf32>
    %56 = arith.select %54, %52, %55 : vector<16x32xi1>, vector<16x32xf32>
    %c1_i32_18 = arith.constant 1 : i32
    %57 = tpu.dynamic_rotate %50 by %c1_i32_18 dim 0 : vector<16x32xf32>, i32 -> vector<16x32xf32>
    %cst_19 = arith.constant 0.000000e+00 : f32
    %58 = vector.shape_cast %20 : vector<16x1xi1> to vector<16x1xi1>
    %59 = vector.broadcast %58 : vector<16x1xi1> to vector<16x32xi1>
    %60 = vector.broadcast %cst_19 : f32 to vector<16x32xf32>
    %61 = arith.select %59, %57, %60 : vector<16x32xi1>, vector<16x32xf32>
    %62 = tpu.concatenate %56, %61, %50 in 1 : vector<16x32xf32>, vector<16x32xf32>, vector<16x32xf32> -> vector<16x96xf32>
    %c112 = arith.constant 112 : index
    %c0_20 = arith.constant 0 : index
    %63 = vector.load %arg1[%c112, %c0_20] : memref<432x64xbf16, #tpu.memory_space<vmem>>, vector<96x32xbf16>
    %64 = arith.truncf %62 : vector<16x96xf32> to vector<16x96xbf16>
    %cst_21 = arith.constant dense<0.000000e+00> : vector<16x32xf32>
    %65 = tpu.matmul %64, %63, %cst_21 {dimension_numbers = #tpu.dot_dimension_numbers<[1], [0], [0], [1], [0, 0, 1, 1], [], []>} : vector<16x96xbf16>, vector<96x32xbf16>, vector<16x32xf32> -> vector<16x32xf32>
    %66 = vector.extract_strided_slice %1 {offsets = [2, 0], sizes = [1, 32], strides = [1, 1]} : vector<8x64xf32> to vector<1x32xf32>
    %67 = vector.broadcast %66 : vector<1x32xf32> to vector<16x32xf32>
    %68 = arith.addf %65, %67 : vector<16x32xf32>
    %cst_22 = arith.constant 0.000000e+00 : f32
    %69 = vector.broadcast %cst_22 : f32 to vector<16x32xf32>
    %70 = arith.maximumf %68, %69 : vector<16x32xf32>
    %71 = arith.addf %70, %51 : vector<16x32xf32>
    %cst_23 = arith.constant 0.000000e+00 : f32
    %72 = vector.broadcast %cst_23 : f32 to vector<16x32xf32>
    %73 = arith.maximumf %71, %72 : vector<16x32xf32>
    %c4_i32_24 = arith.constant 4 : i32
    %74 = tpu.dynamic_rotate %73 by %c4_i32_24 dim 0 : vector<16x32xf32>, i32 -> vector<16x32xf32>
    %cst_25 = arith.constant 0.000000e+00 : f32
    %75 = vector.shape_cast %24 : vector<16x1xi1> to vector<16x1xi1>
    %76 = vector.broadcast %75 : vector<16x1xi1> to vector<16x32xi1>
    %77 = vector.broadcast %cst_25 : f32 to vector<16x32xf32>
    %78 = arith.select %76, %74, %77 : vector<16x32xi1>, vector<16x32xf32>
    %c2_i32_26 = arith.constant 2 : i32
    %79 = tpu.dynamic_rotate %73 by %c2_i32_26 dim 0 : vector<16x32xf32>, i32 -> vector<16x32xf32>
    %cst_27 = arith.constant 0.000000e+00 : f32
    %80 = vector.shape_cast %22 : vector<16x1xi1> to vector<16x1xi1>
    %81 = vector.broadcast %80 : vector<16x1xi1> to vector<16x32xi1>
    %82 = vector.broadcast %cst_27 : f32 to vector<16x32xf32>
    %83 = arith.select %81, %79, %82 : vector<16x32xi1>, vector<16x32xf32>
    %84 = tpu.concatenate %78, %83, %73 in 1 : vector<16x32xf32>, vector<16x32xf32>, vector<16x32xf32> -> vector<16x96xf32>
    %c208 = arith.constant 208 : index
    %c0_28 = arith.constant 0 : index
    %85 = vector.load %arg1[%c208, %c0_28] : memref<432x64xbf16, #tpu.memory_space<vmem>>, vector<96x64xbf16>
    %86 = arith.truncf %84 : vector<16x96xf32> to vector<16x96xbf16>
    %cst_29 = arith.constant dense<0.000000e+00> : vector<16x64xf32>
    %87 = tpu.matmul %86, %85, %cst_29 {dimension_numbers = #tpu.dot_dimension_numbers<[1], [0], [0], [1], [0, 0, 1, 1], [], []>} : vector<16x96xbf16>, vector<96x64xbf16>, vector<16x64xf32> -> vector<16x64xf32>
    %88 = vector.extract_strided_slice %1 {offsets = [3, 0], sizes = [1, 64], strides = [1, 1]} : vector<8x64xf32> to vector<1x64xf32>
    %89 = vector.broadcast %88 : vector<1x64xf32> to vector<16x64xf32>
    %90 = arith.addf %87, %89 : vector<16x64xf32>
    %91 = vector.extract_strided_slice %90 {offsets = [0, 0], sizes = [16, 32], strides = [1, 1]} : vector<16x64xf32> to vector<16x32xf32>
    %cst_30 = arith.constant 0.000000e+00 : f32
    %92 = vector.broadcast %cst_30 : f32 to vector<16x32xf32>
    %93 = arith.maximumf %91, %92 : vector<16x32xf32>
    %94 = vector.extract_strided_slice %90 {offsets = [0, 32], sizes = [16, 32], strides = [1, 1]} : vector<16x64xf32> to vector<16x32xf32>
    %c4_i32_31 = arith.constant 4 : i32
    %95 = tpu.dynamic_rotate %93 by %c4_i32_31 dim 0 : vector<16x32xf32>, i32 -> vector<16x32xf32>
    %cst_32 = arith.constant 0.000000e+00 : f32
    %96 = vector.shape_cast %24 : vector<16x1xi1> to vector<16x1xi1>
    %97 = vector.broadcast %96 : vector<16x1xi1> to vector<16x32xi1>
    %98 = vector.broadcast %cst_32 : f32 to vector<16x32xf32>
    %99 = arith.select %97, %95, %98 : vector<16x32xi1>, vector<16x32xf32>
    %c2_i32_33 = arith.constant 2 : i32
    %100 = tpu.dynamic_rotate %93 by %c2_i32_33 dim 0 : vector<16x32xf32>, i32 -> vector<16x32xf32>
    %cst_34 = arith.constant 0.000000e+00 : f32
    %101 = vector.shape_cast %22 : vector<16x1xi1> to vector<16x1xi1>
    %102 = vector.broadcast %101 : vector<16x1xi1> to vector<16x32xi1>
    %103 = vector.broadcast %cst_34 : f32 to vector<16x32xf32>
    %104 = arith.select %102, %100, %103 : vector<16x32xi1>, vector<16x32xf32>
    %105 = tpu.concatenate %99, %104, %93 in 1 : vector<16x32xf32>, vector<16x32xf32>, vector<16x32xf32> -> vector<16x96xf32>
    %c304 = arith.constant 304 : index
    %c0_35 = arith.constant 0 : index
    %106 = vector.load %arg1[%c304, %c0_35] : memref<432x64xbf16, #tpu.memory_space<vmem>>, vector<96x32xbf16>
    %107 = arith.truncf %105 : vector<16x96xf32> to vector<16x96xbf16>
    %cst_36 = arith.constant dense<0.000000e+00> : vector<16x32xf32>
    %108 = tpu.matmul %107, %106, %cst_36 {dimension_numbers = #tpu.dot_dimension_numbers<[1], [0], [0], [1], [0, 0, 1, 1], [], []>} : vector<16x96xbf16>, vector<96x32xbf16>, vector<16x32xf32> -> vector<16x32xf32>
    %109 = vector.extract_strided_slice %1 {offsets = [4, 0], sizes = [1, 32], strides = [1, 1]} : vector<8x64xf32> to vector<1x32xf32>
    %110 = vector.broadcast %109 : vector<1x32xf32> to vector<16x32xf32>
    %111 = arith.addf %108, %110 : vector<16x32xf32>
    %cst_37 = arith.constant 0.000000e+00 : f32
    %112 = vector.broadcast %cst_37 : f32 to vector<16x32xf32>
    %113 = arith.maximumf %111, %112 : vector<16x32xf32>
    %114 = arith.addf %113, %94 : vector<16x32xf32>
    %cst_38 = arith.constant 0.000000e+00 : f32
    %115 = vector.broadcast %cst_38 : f32 to vector<16x32xf32>
    %116 = arith.maximumf %114, %115 : vector<16x32xf32>
    %c400 = arith.constant 400 : index
    %c0_39 = arith.constant 0 : index
    %117 = vector.load %arg1[%c400, %c0_39] : memref<432x64xbf16, #tpu.memory_space<vmem>>, vector<32x32xbf16>
    %118 = arith.truncf %116 : vector<16x32xf32> to vector<16x32xbf16>
    %cst_40 = arith.constant dense<0.000000e+00> : vector<16x32xf32>
    %119 = tpu.matmul %118, %117, %cst_40 {dimension_numbers = #tpu.dot_dimension_numbers<[1], [0], [0], [1], [0, 0, 1, 1], [], []>} : vector<16x32xbf16>, vector<32x32xbf16>, vector<16x32xf32> -> vector<16x32xf32>
    %120 = vector.extract_strided_slice %1 {offsets = [5, 0], sizes = [1, 32], strides = [1, 1]} : vector<8x64xf32> to vector<1x32xf32>
    %121 = vector.broadcast %120 : vector<1x32xf32> to vector<16x32xf32>
    %122 = arith.addf %119, %121 : vector<16x32xf32>
    %123 = arith.addf %122, %30 : vector<16x32xf32>
    %cst_41 = arith.constant 0.707106769 : f32
    %124 = vector.broadcast %cst_41 : f32 to vector<16x32xf32>
    %125 = arith.mulf %123, %124 : vector<16x32xf32>
    %126 = tpu.concatenate %122, %125 in 1 : vector<16x32xf32>, vector<16x32xf32> -> vector<16x64xf32>
    %c0_42 = arith.constant 0 : index
    %c0_43 = arith.constant 0 : index
    %127 = vector.load %arg3[%c0_42, %c0_43] : memref<16x64xf32, #tpu.memory_space<vmem>>, vector<16x64xf32>
    tpu.vector_store %arg3[%c0_42, %c0_43], %126 {strides = array<i32>} : memref<16x64xf32, #tpu.memory_space<vmem>>, vector<16x64xf32>,
    return
  }
}

</mosaic_0001>

<llo_original>
// kernel: encoder_forward.1
$region0: #{encoder_forward.1}
  #allocation0 [shape = 'u32[]', space=smem, size = 0x4, offset = 0x4, fixed_abs, tag = 'smem constant byte address 0x4 - core index']
  #allocation1 [shape = 'u32[72,128]{1,0:T(1,128)}', space=vmem, size = 0x9000, scoped, tag = 'internal scratch']
  %s0 = inlined_call_operand.vmem [shape: f32[16,16], index: 0, kind: input, shape index: {}]
  %s1 = inlined_call_operand.vmem [shape: bf16[432,64], index: 1, kind: input, shape index: {}]
  %s2 = inlined_call_operand.vmem [shape: f32[8,64], index: 2, kind: input, shape index: {}]
  %s3 = inlined_call_operand.vmem [shape: f32[16,64], index: 3, kind: output, shape index: {}]
  %s4 = sld [smem:[#allocation0]]
  $region22: #{encoder_forward.1} parent=0
    _
  %s6 = ssub.s32 1, %s4
  %s7 = scalar_select 0, %s6, %s4
  // Predicated region
  $region2: #{encoder_forward.1} parent=0 // pred_check
    _
  $region3: #{encoder_forward.1} parent=0 // pred_check_branch
    %9 = sbr.rel (0) target = $region5
  $region4: #{encoder_forward.1} parent=0 // pred_region
    _
  $region5: #{encoder_forward.1} parent=0 // pred_fallthru
    _
  // Predicated region
  $region6: #{encoder_forward.1} parent=0 // pred_check
    _
  $region7: #{encoder_forward.1} parent=0 // pred_check_branch
    %11 = sbr.rel (0) target = $region9
  $region8: #{encoder_forward.1} parent=0 // pred_region
    _
  $region9: #{encoder_forward.1} parent=0 // pred_fallthru
    _
  // Predicated region
  $region10: #{encoder_forward.1} parent=0 // pred_check
    _
  $region11: #{encoder_forward.1} parent=0 // pred_check_branch
    %13 = sbr.rel (0) target = $region13
  $region12: #{encoder_forward.1} parent=0 // pred_region
    _
  $region13: #{encoder_forward.1} parent=0 // pred_fallthru
    _
  %v15 = vld [vmem:[%s0] sm:$0xff]
  %v16 = vld [vmem:[%s0 + $0x8] sm:$0xff]
  %v17 = vld [vmem:[%s2] sm:$0xff]
  %v18 = vlaneseq
  %v19 = vshrl.u32 %v18, 7
  %v20 = vadd.s32 %v19, 8
  %vm21 = vcmp.lt.s32.totalorder %v19, 0
  %v22 = vsub.s32 0, %v19
  %v23 = vsel %vm21, %v22, %v19
  %v24 = vshrl.u32 %v23, 3
  %v25 = vand.u32 %v23, 7
  %v26 = vsub.s32 0, %v25
  %v27 = vsel %vm21, %v26, %v25
  %vm28 = vcmp.lt.s32.totalorder %v20, 0
  %v29 = vsub.s32 0, %v20
  %v30 = vsel %vm28, %v29, %v20
  %v31 = vshrl.u32 %v30, 3
  %v32 = vand.u32 %v30, 7
  %v33 = vsub.s32 0, %v32
  %v34 = vsel %vm28, %v33, %v32
  %vm35 = vcmp.ne.s32.totalorder %v27, 0
  %vm36 = vcmp.ne.s32.totalorder %v34, 0
  %vm37 = vcmp.lt.s32.totalorder %v27, 0
  %vm38 = vcmp.lt.s32.totalorder %v34, 0
  %vm39 = vmand %vm37, %vm35
  %vm40 = vmand %vm38, %vm36
  %v41 = vadd.s32 %v27, 8
  %v42 = vadd.s32 %v34, 8
  %v43 = vsel %vm39, %v41, %v27
  %v44 = vsel %vm40, %v42, %v34
  %vm45 = vcmp.ge.s32.totalorder %v43, 1
  %vm46 = vcmp.ge.s32.totalorder %v44, 1
  %vm47 = vcmp.ge.s32.totalorder %v43, 2
  %vm48 = vcmp.ge.s32.totalorder %v44, 2
  %vm49 = vcmp.ge.s32.totalorder %v43, 4
  %vm50 = vcmp.ge.s32.totalorder %v44, 4
  %v51 = vld [vmem:[%s1] sm:$0xf]
  %v52 = vld [vmem:[%s1 + $0x4] sm:$0xf]
  %v53 = vpack.c.bf16 %v16, %v15
  %v54 = vperm.slane %v17, 0
  %v57 = vunpack.c.l.b16 %v51
  %v58 = vunpack.c.l.b16 %v52
  %v59 = vpack.c.b16 %v58, %v57
  %vm61 = vcmask 130048
  %v63 = vsel %vm61, %v53, 0
  %65 = vmatpush.bf16.msra.mxu0 0
  %66 = vmatpush.bf16.msra.mxu0 0
  %67 = vmatpush.bf16.msra.mxu0 0
  %68 = vmatpush.bf16.msra.mxu0 0
  %69 = vmatpush.bf16.msra.mxu0 0
  %70 = vmatpush.bf16.msra.mxu0 0
  %71 = vmatpush.bf16.msra.mxu0 0
  %72 = vmatpush.bf16.msra.mxu0 %v59
  %73 = vmatmul.bf16.gmra.mxu0 %v63
  %v74 = vpop.f32.mrf.mxu0
  %v75 = vadd.f32 %v54, %v74
  %v76 = vpop.f32.mrf.mxu0
  %v77 = vadd.f32 %v54, %v76
  %78 = vdwg.mxu0
  %v79 = vrot.slane %v75, 6
  %v80 = vrot.slane %v77, 6
  %vm81 = vcmp.lt.s32.totalorder %v19, 2
  %v82 = vsel %vm81, %v79, %v80
  %v83 = vsel %vm81, %v80, %v79
  %v84 = vsel %vm47, 1, 0
  %v85 = vsel %vm48, 1, 0
  %vm86 = vcmp.eq.s32.totalorder %v84, 1
  %vm87 = vcmp.eq.s32.totalorder %v85, 1
  %v88 = vsel %vm86, %v83, 0.0
  %v89 = vsel %vm87, %v82, 0.0
  %v90 = vrot.slane %v75, 7
  %v91 = vrot.slane %v77, 7
  %vm92 = vcmp.lt.s32.totalorder %v19, 1
  %v93 = vsel %vm92, %v90, %v91
  %v94 = vsel %vm92, %v91, %v90
  %v95 = vsel %vm45, 1, 0
  %v96 = vsel %vm46, 1, 0
  %vm97 = vcmp.eq.s32.totalorder %v95, 1
  %vm98 = vcmp.eq.s32.totalorder %v96, 1
  %v99 = vsel %vm97, %v94, 0.0
  %v100 = vsel %vm98, %v93, 0.0
  %103 = vrot.lane.b32.xlu0 %v99, 32
  %v104 = vpop.permute.xlu0 %103
  %105 = vrot.lane.b32.xlu0 %v100, 32
  %v106 = vpop.permute.xlu0 %105
  %111 = vrot.lane.b32.xlu0 %v75, 64
  %v112 = vpop.permute.xlu0 %111
  %113 = vrot.lane.b32.xlu0 %v77, 64
  %v114 = vpop.permute.xlu0 %113
  %vm117 = vcmask 261120
  %v118 = vsel %vm117, %v88, %v104
  %v119 = vsel %vm117, %v89, %v106
  %vm120 = vcmask 523264
  %v121 = vsel %vm120, %v118, %v112
  %v122 = vsel %vm120, %v119, %v114
  %v123 = vld [vmem:[%s1 + $0x8] sm:$0xf]
  %v124 = vld [vmem:[%s1 + $0xc] sm:$0xf]
  %v125 = vld [vmem:[%s1 + $0x10] sm:$0xf]
  %v126 = vld [vmem:[%s1 + $0x14] sm:$0xf]
  %v127 = vld [vmem:[%s1 + $0x18] sm:$0xf]
  %v128 = vld [vmem:[%s1 + $0x1c] sm:$0xf]
  %v129 = vld [vmem:[%s1 + $0x20] sm:$0xf]
  %v130 = vld [vmem:[%s1 + $0x24] sm:$0xf]
  %v131 = vld [vmem:[%s1 + $0x28] sm:$0xf]
  %v132 = vld [vmem:[%s1 + $0x2c] sm:$0xf]
  %v133 = vld [vmem:[%s1 + $0x30] sm:$0xf]
  %v134 = vld [vmem:[%s1 + $0x34] sm:$0xf]
  %v135 = vpack.c.bf16 %v122, %v121
  %v136 = vperm.slane %v17, 1
  %v149 = vunpack.c.l.b16 %v123
  %v150 = vunpack.c.l.b16 %v124
  %v151 = vunpack.c.l.b16 %v125
  %v152 = vunpack.c.l.b16 %v126
  %v153 = vunpack.c.l.b16 %v127
  %v154 = vunpack.c.l.b16 %v128
  %v155 = vunpack.c.l.b16 %v129
  %v156 = vunpack.c.l.b16 %v130
  %v157 = vunpack.c.l.b16 %v131
  %v158 = vunpack.c.l.b16 %v132
  %v159 = vunpack.c.l.b16 %v133
  %v160 = vunpack.c.l.b16 %v134
  %v161 = vpack.c.b16 %v150, %v149
  %v162 = vpack.c.b16 %v152, %v151
  %v163 = vpack.c.b16 %v154, %v153
  %v164 = vpack.c.b16 %v156, %v155
  %v165 = vpack.c.b16 %v158, %v157
  %v166 = vpack.c.b16 %v160, %v159
  %vm173 = vcmask 785408
  %v175 = vsel %vm173, %v135, 0
  %177 = vmatpush.bf16.msra.mxu0 0
  %178 = vmatpush.bf16.msra.mxu0 0
  %179 = vmatpush.bf16.msra.mxu0 %v166
  %180 = vmatpush.bf16.msra.mxu0 %v165
  %181 = vmatpush.bf16.msra.mxu0 %v164
  %182 = vmatpush.bf16.msra.mxu0 %v163
  %183 = vmatpush.bf16.msra.mxu0 %v162
  %184 = vmatpush.bf16.msra.mxu0 %v161
  %185 = vmatmul.bf16.gmra.mxu0 %v175
  %v186 = vpop.f32.mrf.mxu0
  %v187 = vadd.f32 %v136, %v186
  %v188 = vpop.f32.mrf.mxu0
  %v189 = vadd.f32 %v136, %v188
  %190 = vdwg.mxu0
  %v191 = vmax.f32 %v187, 0.0
  %v192 = vmax.f32 %v189, 0.0
  %v193 = vrot.slane %v191, 6
  %v194 = vrot.slane %v192, 6
  %v195 = vsel %vm81, %v193, %v194
  %v196 = vsel %vm81, %v194, %v193
  %v197 = vsel %vm86, %v196, 0.0
  %v198 = vsel %vm87, %v195, 0.0
  %v199 = vrot.slane %v191, 7
  %v200 = vrot.slane %v192, 7
  %v201 = vsel %vm92, %v199, %v200
  %v202 = vsel %vm92, %v200, %v199
  %v203 = vsel %vm97, %v202, 0.0
  %v204 = vsel %vm98, %v201, 0.0
  %207 = vrot.lane.b32.xlu0 %v203, 32
  %v208 = vpop.permute.xlu0 %207
  %209 = vrot.lane.b32.xlu0 %v204, 32
  %v210 = vpop.permute.xlu0 %209
  %215 = vrot.lane.b32.xlu0 %v191, 64
  %v216 = vpop.permute.xlu0 %215
  %217 = vrot.lane.b32.xlu0 %v192, 64
  %v218 = vpop.permute.xlu0 %217
  %v221 = vsel %vm117, %v197, %v208
  %v222 = vsel %vm117, %v198, %v210
  %v223 = vsel %vm120, %v221, %v216
  %v224 = vsel %vm120, %v222, %v218
  %v225 = vld [vmem:[%s1 + $0x38] sm:$0xf]
  %v226 = vld [vmem:[%s1 + $0x3c] sm:$0xf]
  %v227 = vld [vmem:[%s1 + $0x40] sm:$0xf]
  %v228 = vld [vmem:[%s1 + $0x44] sm:$0xf]
  %v229 = vld [vmem:[%s1 + $0x48] sm:$0xf]
  %v230 = vld [vmem:[%s1 + $0x4c] sm:$0xf]
  %v231 = vld [vmem:[%s1 + $0x50] sm:$0xf]
  %v232 = vld [vmem:[%s1 + $0x54] sm:$0xf]
  %v233 = vld [vmem:[%s1 + $0x58] sm:$0xf]
  %v234 = vld [vmem:[%s1 + $0x5c] sm:$0xf]
  %v235 = vld [vmem:[%s1 + $0x60] sm:$0xf]
  %v236 = vld [vmem:[%s1 + $0x64] sm:$0xf]
  %v237 = vpack.c.bf16 %v224, %v223
  %v238 = vperm.slane %v17, 2
  %v251 = vunpack.c.l.b16 %v225
  %v252 = vunpack.c.l.b16 %v226
  %v253 = vunpack.c.l.b16 %v227
  %v254 = vunpack.c.l.b16 %v228
  %v255 = vunpack.c.l.b16 %v229
  %v256 = vunpack.c.l.b16 %v230
  %v257 = vunpack.c.l.b16 %v231
  %v258 = vunpack.c.l.b16 %v232
  %v259 = vunpack.c.l.b16 %v233
  %v260 = vunpack.c.l.b16 %v234
  %v261 = vunpack.c.l.b16 %v235
  %v262 = vunpack.c.l.b16 %v236
  %v263 = vpack.c.b16 %v252, %v251
  %v264 = vpack.c.b16 %v254, %v253
  %v265 = vpack.c.b16 %v256, %v255
  %v266 = vpack.c.b16 %v258, %v257
  %v267 = vpack.c.b16 %v260, %v259
  %v268 = vpack.c.b16 %v262, %v261
  %v276 = vsel %vm173, %v237, 0
  %278 = vmatpush.bf16.msra.mxu0 0
  %279 = vmatpush.bf16.msra.mxu0 0
  %280 = vmatpush.bf16.msra.mxu0 %v268
  %281 = vmatpush.bf16.msra.mxu0 %v267
  %282 = vmatpush.bf16.msra.mxu0 %v266
  %283 = vmatpush.bf16.msra.mxu0 %v265
  %284 = vmatpush.bf16.msra.mxu0 %v264
  %285 = vmatpush.bf16.msra.mxu0 %v263
  %286 = vmatmul.bf16.gmra.mxu0 %v276
  %v287 = vpop.f32.mrf.mxu0
  %v288 = vadd.f32 %v238, %v287
  %v289 = vpop.f32.mrf.mxu0
  %v290 = vadd.f32 %v238, %v289
  %291 = vdwg.mxu0
  %v292 = vmax.f32 %v288, 0.0
  %v293 = vmax.f32 %v290, 0.0
  %296 = vrot.lane.b32.xlu0 %v187, 96
  %v297 = vpop.permute.xlu0 %296
  %298 = vrot.lane.b32.xlu0 %v189, 96
  %v299 = vpop.permute.xlu0 %298
  %v302 = vadd.f32 %v292, %v297
  %v303 = vadd.f32 %v293, %v299
  %v304 = vmax.f32 %v302, 0.0
  %v305 = vmax.f32 %v303, 0.0
  %v306 = vrot.slane %v304, 4
  %v307 = vrot.slane %v305, 4
  %vm308 = vcmp.lt.s32.totalorder %v19, 4
  %v309 = vsel %vm308, %v306, %v307
  %v310 = vsel %vm308, %v307, %v306
  %v311 = vsel %vm49, 1, 0
  %v312 = vsel %vm50, 1, 0
  %vm313 = vcmp.eq.s32.totalorder %v311, 1
  %vm314 = vcmp.eq.s32.totalorder %v312, 1
  %v315 = vsel %vm313, %v310, 0.0
  %v316 = vsel %vm314, %v309, 0.0
  %v317 = vrot.slane %v304, 6
  %v318 = vrot.slane %v305, 6
  %v319 = vsel %vm81, %v317, %v318
  %v320 = vsel %vm81, %v318, %v317
  %v321 = vsel %vm86, %v320, 0.0
  %v322 = vsel %vm87, %v319, 0.0
  %325 = vrot.lane.b32.xlu0 %v321, 32
  %v326 = vpop.permute.xlu0 %325
  %327 = vrot.lane.b32.xlu0 %v322, 32
  %v328 = vpop.permute.xlu0 %327
  %333 = vrot.lane.b32.xlu0 %v304, 64
  %v334 = vpop.permute.xlu0 %333
  %335 = vrot.lane.b32.xlu0 %v305, 64
  %v336 = vpop.permute.xlu0 %335
  %v339 = vsel %vm117, %v315, %v326
  %v340 = vsel %vm117, %v316, %v328
  %v341 = vsel %vm120, %v339, %v334
  %v342 = vsel %vm120, %v340, %v336
  %v343 = vld [vmem:[%s1 + $0x68] sm:$0xf]
  %v344 = vld [vmem:[%s1 + $0x6c] sm:$0xf]
  %v345 = vld [vmem:[%s1 + $0x70] sm:$0xf]
  %v346 = vld [vmem:[%s1 + $0x74] sm:$0xf]
  %v347 = vld [vmem:[%s1 + $0x78] sm:$0xf]
  %v348 = vld [vmem:[%s1 + $0x7c] sm:$0xf]
  %v349 = vld [vmem:[%s1 + $0x80] sm:$0xf]
  %v350 = vld [vmem:[%s1 + $0x84] sm:$0xf]
  %v351 = vld [vmem:[%s1 + $0x88] sm:$0xf]
  %v352 = vld [vmem:[%s1 + $0x8c] sm:$0xf]
  %v353 = vld [vmem:[%s1 + $0x90] sm:$0xf]
  %v354 = vld [vmem:[%s1 + $0x94] sm:$0xf]
  %v355 = vpack.c.bf16 %v342, %v341
  %v356 = vperm.slane %v17, 3
  %v369 = vunpack.c.l.b16 %v343
  %v370 = vunpack.c.l.b16 %v344
  %v371 = vunpack.c.l.b16 %v345
  %v372 = vunpack.c.l.b16 %v346
  %v373 = vunpack.c.l.b16 %v347
  %v374 = vunpack.c.l.b16 %v348
  %v375 = vunpack.c.l.b16 %v349
  %v376 = vunpack.c.l.b16 %v350
  %v377 = vunpack.c.l.b16 %v351
  %v378 = vunpack.c.l.b16 %v352
  %v379 = vunpack.c.l.b16 %v353
  %v380 = vunpack.c.l.b16 %v354
  %v381 = vpack.c.b16 %v370, %v369
  %v382 = vpack.c.b16 %v372, %v371
  %v383 = vpack.c.b16 %v374, %v373
  %v384 = vpack.c.b16 %v376, %v375
  %v385 = vpack.c.b16 %v378, %v377
  %v386 = vpack.c.b16 %v380, %v379
  %v394 = vsel %vm173, %v355, 0
  %396 = vmatpush.bf16.msra.mxu0 0
  %397 = vmatpush.bf16.msra.mxu0 0
  %398 = vmatpush.bf16.msra.mxu0 %v386
  %399 = vmatpush.bf16.msra.mxu0 %v385
  %400 = vmatpush.bf16.msra.mxu0 %v384
  %401 = vmatpush.bf16.msra.mxu0 %v383
  %402 = vmatpush.bf16.msra.mxu0 %v382
  %403 = vmatpush.bf16.msra.mxu0 %v381
  %404 = vmatmul.bf16.gmra.mxu0 %v394
  %v405 = vpop.f32.mrf.mxu0
  %v406 = vadd.f32 %v356, %v405
  %v407 = vpop.f32.mrf.mxu0
  %v408 = vadd.f32 %v356, %v407
  %409 = vdwg.mxu0
  %v410 = vmax.f32 %v406, 0.0
  %v411 = vmax.f32 %v408, 0.0
  %v412 = vrot.slane %v410, 4
  %v413 = vrot.slane %v411, 4
  %v414 = vsel %vm308, %v412, %v413
  %v415 = vsel %vm308, %v413, %v412
  %v416 = vsel %vm313, %v415, 0.0
  %v417 = vsel %vm314, %v414, 0.0
  %v418 = vrot.slane %v410, 6
  %v419 = vrot.slane %v411, 6
  %v420 = vsel %vm81, %v418, %v419
  %v421 = vsel %vm81, %v419, %v418
  %v422 = vsel %vm86, %v421, 0.0
  %v423 = vsel %vm87, %v420, 0.0
  %426 = vrot.lane.b32.xlu0 %v422, 32
  %v427 = vpop.permute.xlu0 %426
  %428 = vrot.lane.b32.xlu0 %v423, 32
  %v429 = vpop.permute.xlu0 %428
  %434 = vrot.lane.b32.xlu0 %v410, 64
  %v435 = vpop.permute.xlu0 %434
  %436 = vrot.lane.b32.xlu0 %v411, 64
  %v437 = vpop.permute.xlu0 %436
  %v440 = vsel %vm117, %v416, %v427
  %v441 = vsel %vm117, %v417, %v429
  %v442 = vsel %vm120, %v440, %v435
  %v443 = vsel %vm120, %v441, %v437
  %v444 = vld [vmem:[%s1 + $0x98] sm:$0xf]
  %v445 = vld [vmem:[%s1 + $0x9c] sm:$0xf]
  %v446 = vld [vmem:[%s1 + $0xa0] sm:$0xf]
  %v447 = vld [vmem:[%s1 + $0xa4] sm:$0xf]
  %v448 = vld [vmem:[%s1 + $0xa8] sm:$0xf]
  %v449 = vld [vmem:[%s1 + $0xac] sm:$0xf]
  %v450 = vld [vmem:[%s1 + $0xb0] sm:$0xf]
  %v451 = vld [vmem:[%s1 + $0xb4] sm:$0xf]
  %v452 = vld [vmem:[%s1 + $0xb8] sm:$0xf]
  %v453 = vld [vmem:[%s1 + $0xbc] sm:$0xf]
  %v454 = vld [vmem:[%s1 + $0xc0] sm:$0xf]
  %v455 = vld [vmem:[%s1 + $0xc4] sm:$0xf]
  %v456 = vpack.c.bf16 %v443, %v442
  %v457 = vperm.slane %v17, 4
  %v470 = vunpack.c.l.b16 %v444
  %v471 = vunpack.c.l.b16 %v445
  %v472 = vunpack.c.l.b16 %v446
  %v473 = vunpack.c.l.b16 %v447
  %v474 = vunpack.c.l.b16 %v448
  %v475 = vunpack.c.l.b16 %v449
  %v476 = vunpack.c.l.b16 %v450
  %v477 = vunpack.c.l.b16 %v451
  %v478 = vunpack.c.l.b16 %v452
  %v479 = vunpack.c.l.b16 %v453
  %v480 = vunpack.c.l.b16 %v454
  %v481 = vunpack.c.l.b16 %v455
  %v482 = vpack.c.b16 %v471, %v470
  %v483 = vpack.c.b16 %v473, %v472
  %v484 = vpack.c.b16 %v475, %v474
  %v485 = vpack.c.b16 %v477, %v476
  %v486 = vpack.c.b16 %v479, %v478
  %v487 = vpack.c.b16 %v481, %v480
  %v495 = vsel %vm173, %v456, 0
  %497 = vmatpush.bf16.msra.mxu0 0
  %498 = vmatpush.bf16.msra.mxu0 0
  %499 = vmatpush.bf16.msra.mxu0 %v487
  %500 = vmatpush.bf16.msra.mxu0 %v486
  %501 = vmatpush.bf16.msra.mxu0 %v485
  %502 = vmatpush.bf16.msra.mxu0 %v484
  %503 = vmatpush.bf16.msra.mxu0 %v483
  %504 = vmatpush.bf16.msra.mxu0 %v482
  %505 = vmatmul.bf16.gmra.mxu0 %v495
  %v506 = vpop.f32.mrf.mxu0
  %v507 = vadd.f32 %v457, %v506
  %v508 = vpop.f32.mrf.mxu0
  %v509 = vadd.f32 %v457, %v508
  %510 = vdwg.mxu0
  %v511 = vmax.f32 %v507, 0.0
  %v512 = vmax.f32 %v509, 0.0
  %515 = vrot.lane.b32.xlu0 %v406, 96
  %v516 = vpop.permute.xlu0 %515
  %517 = vrot.lane.b32.xlu0 %v408, 96
  %v518 = vpop.permute.xlu0 %517
  %v521 = vadd.f32 %v511, %v516
  %v522 = vadd.f32 %v512, %v518
  %v523 = vmax.f32 %v521, 0.0
  %v524 = vmax.f32 %v522, 0.0
  %v525 = vld [vmem:[%s1 + $0xc8] sm:$0xf]
  %v526 = vld [vmem:[%s1 + $0xcc] sm:$0xf]
  %v527 = vld [vmem:[%s1 + $0xd0] sm:$0xf]
  %v528 = vld [vmem:[%s1 + $0xd4] sm:$0xf]
  %v529 = vpack.c.bf16 %v524, %v523
  %v530 = vperm.slane %v17, 5
  %v535 = vunpack.c.l.b16 %v525
  %v536 = vunpack.c.l.b16 %v526
  %v537 = vunpack.c.l.b16 %v527
  %v538 = vunpack.c.l.b16 %v528
  %v539 = vpack.c.b16 %v536, %v535
  %v540 = vpack.c.b16 %v538, %v537
  %v544 = vsel %vm117, %v529, 0
  %546 = vmatpush.bf16.msra.mxu0 0
  %547 = vmatpush.bf16.msra.mxu0 0
  %548 = vmatpush.bf16.msra.mxu0 0
  %549 = vmatpush.bf16.msra.mxu0 0
  %550 = vmatpush.bf16.msra.mxu0 0
  %551 = vmatpush.bf16.msra.mxu0 0
  %552 = vmatpush.bf16.msra.mxu0 %v540
  %553 = vmatpush.bf16.msra.mxu0 %v539
  %554 = vmatmul.bf16.gmra.mxu0 %v544
  %v555 = vpop.f32.mrf.mxu0
  %v556 = vadd.f32 %v530, %v555
  %v557 = vpop.f32.mrf.mxu0
  %v558 = vadd.f32 %v530, %v557
  %559 = vdwg.mxu0
  %v560 = vadd.f32 %v556, %v75
  %v561 = vadd.f32 %v558, %v77
  %v562 = vmul.f32 %v560, 0.70710677
  %v563 = vmul.f32 %v561, 0.70710677
  %566 = vrot.lane.b32.xlu0 %v562, 32
  %v567 = vpop.permute.xlu0 %566
  %568 = vrot.lane.b32.xlu0 %v563, 32
  %v569 = vpop.permute.xlu0 %568
  %v572 = vsel %vm117, %v556, %v567
  %v573 = vsel %vm117, %v558, %v569
  %574 = vst.msk [vmem:[%s3] sm:$0xff] %vm120, %v572
  %575 = vst.msk [vmem:[%s3 + $0x8] sm:$0xff] %vm120, %v573
  // Predicated region
  $region14: #{encoder_forward.1} parent=0 // pred_check
    _
  $region15: #{encoder_forward.1} parent=0 // pred_check_branch
    %577 = sbr.rel (0) target = $region17
  $region16: #{encoder_forward.1} parent=0 // pred_region
    _
  $region17: #{encoder_forward.1} parent=0 // pred_fallthru
    _
  // Predicated region
  $region18: #{encoder_forward.1} parent=0 // pred_check
    _
  $region19: #{encoder_forward.1} parent=0 // pred_check_branch
    %579 = sbr.rel (0) target = $region21
  $region20: #{encoder_forward.1} parent=0 // pred_region
    _
  $region21: #{encoder_forward.1} parent=0 // pred_fallthru
    _

</llo_original>
